<compile_context>
chip_gen: v5e
topology: v5e:2x2
jax: 0.10.0
libtpu: 0.0.40
codegen_flags: <defaults>
</compile_context>

<pallas_src>
import jax
import jax.numpy as jnp
from jax.experimental import pallas as pl
from jax.experimental.pallas import tpu as pltpu


COMPUTE_DTYPE = jnp.bfloat16   # activations/weights on the wire & MXU; accumulate f32


# ----------------------------- kernel ----------------------------------------

def logreg_kernel(x_ref, wt_ref, b_ref, o_ref):
    # x_ref: (TB, D_in) bf16 | wt_ref: (D_in, D_out) bf16 (resident)
    # b_ref: (1, D_out) f32 (resident) | o_ref: (TB, D_out) f32
    logits = jnp.dot(x_ref[...], wt_ref[...],
                     preferred_element_type=jnp.float32) + b_ref[...]
    # Exact sigmoid: memory-bound kernel, so the exact divide hides under DMA and we
    # avoid pl.reciprocal(approx=True)'s ~1e-3 error.  For very negative logits
    # exp(-x)->+inf and 1/(1+inf)==0, which is the correct limit.
    o_ref[...] = (1.0 / (1.0 + jnp.exp(-logits))).astype(o_ref.dtype)


# ----------------------------- sizing helpers ---------------------------------

def _round_up(x, m):
    return ((x + m - 1) // m) * m


def _vmem_capacity_bytes():
    try:
        return int(pltpu.get_tpu_info().vmem_capacity_bytes)  # 64 MiB/TC v7x, 128 MiB v5e/v6e
    except Exception:
        return 64 * 1024 * 1024                                # conservative fallback (v7x)


def _vmem_need_bytes(TB, D_in, D_out, x_bytes, w_bytes, out_bytes):
    """Conservative VMEM footprint: double-buffered x/out tiles PLUS resident weight
    and bias, each counted twice in case the pipeliner double-buffers them too."""
    d_in_l, d_out_l = _round_up(D_in, 128), _round_up(D_out, 128)  # lane padding in VMEM
    w_buf = 2 * _round_up(D_in, 16) * d_out_l * w_bytes
    b_buf = 2 * 8 * d_out_l * 4
    x_buf = 2 * _round_up(TB, 8) * d_in_l * x_bytes
    o_buf = 2 * _round_up(TB, 8) * d_out_l * out_bytes
    return w_buf + b_buf + x_buf + o_buf


def _pick_batch_tile(B, D_in, D_out, x_bytes, w_bytes, out_bytes, vmem_bytes):
    """Largest row tile that (a) fits in half of physical VMEM together with the
    resident weight/bias, and (b) leaves >=4 grid steps when B is large enough
    (both v7x TensorCores fed + DMA/compute overlap on all generations)."""
    sub = 16 if x_bytes < 4 else 8                     # sublane granularity of the x tile
    budget = vmem_bytes // 2                           # headroom for compiler scratch
    resident = _vmem_need_bytes(0, D_in, D_out, x_bytes, w_bytes, out_bytes)
    per_row = 2 * (_round_up(D_in, 128) * x_bytes + _round_up(D_out, 128) * out_bytes)
    tb = (budget - resident) // max(per_row, 1)
    tb = max(sub, min(int(tb), 2048))
    tb = min(tb, max(sub, _round_up(pl.cdiv(B, 4), sub)))   # >= 4 grid steps when B allows
    tb = min(tb, _round_up(B, sub))
    return max(sub, (tb // sub) * sub)


# ----------------------------- parameter prep + forward ------------------------

def prepare_params(weight, bias, compute_dtype=COMPUTE_DTYPE):
    """One-time prep, hoisted out of the per-call path: transpose torch-layout
    weight (D_out, D_in) -> (D_in, D_out), cast to the compute dtype; bias as (1, D_out)."""
    w_t = jnp.asarray(weight).T.astype(compute_dtype)
    b_p = jnp.asarray(bias, dtype=jnp.float32).reshape(1, -1)
    return w_t, b_p


@jax.jit
def logistic_regression_forward(x, w_t, b_p):
    """x: (B, D_in); w_t: (D_in, D_out) prepared; b_p: (1, D_out). Returns f32 (B, D_out)."""
    B, D_in = x.shape
    D_in_w, D_out = w_t.shape
    assert D_in == D_in_w, "input feature dim mismatch"

    x = x.astype(w_t.dtype)           # bf16 on the wire (fuses with the launch under jit)

    x_bytes = x.dtype.itemsize
    w_bytes = w_t.dtype.itemsize
    out_bytes = 4                     # unpadded f32 output: no padded lanes, no wrapper slice
    vmem_cap = _vmem_capacity_bytes()

    TB = _pick_batch_tile(B, D_in, D_out, x_bytes, w_bytes, out_bytes, vmem_cap)
    grid = (pl.cdiv(B, TB),)

    need = _vmem_need_bytes(TB, D_in, D_out, x_bytes, w_bytes, out_bytes)
    vmem_limit = int(min(vmem_cap, max(16 * 1024 * 1024, 2 * need + (1 << 20))))

    return pl.pallas_call(
        logreg_kernel,
        out_shape=jax.ShapeDtypeStruct((B, D_out), jnp.float32),
        grid_spec=pltpu.PrefetchScalarGridSpec(
            num_scalar_prefetch=0,
            grid=grid,
            in_specs=[
                pl.BlockSpec((TB, D_in), lambda i: (i, 0)),     # batch-tiled x (pipelined)
                pl.BlockSpec((D_in, D_out), lambda i: (0, 0)),  # resident weight^T
                pl.BlockSpec((1, D_out), lambda i: (0, 0)),     # resident bias
            ],
            out_specs=pl.BlockSpec((TB, D_out), lambda i: (i, 0)),
        ),
        compiler_params=pltpu.CompilerParams(
            dimension_semantics=("parallel",),     # megacore-shard batch axis (2 TCs on v7x)
            vmem_limit_bytes=vmem_limit,           # explicit limit so chosen TB compiles as-is
        ),
        cost_estimate=pl.CostEstimate(
            flops=2 * B * D_in * D_out,
            transcendentals=B * D_out,
            bytes_accessed=(B * D_in * x_bytes + D_in * D_out * w_bytes
                            + D_out * 4 + B * D_out * out_bytes),
        ),
    )(x, w_t, b_p)


# ----------------------------- demo / correctness check ------------------------

if __name__ == "__main__":
    # Small deterministic setup consistent with the module: input_dim=32, output_dim=8.
    # batch=64 so the batch grid has >=4 steps (exercises pipelining / megacore path).
    batch, input_dim, output_dim = 64, 32, 8

    key = jax.random.PRNGKey(0)
    kx, kw, kb = jax.random.split(key, 3)

    x = jax.random.normal(kx, (batch, input_dim), dtype=jnp.float32)
    # torch.nn.Linear-style uniform(-1/sqrt(in), 1/sqrt(in)) init
    bound = 1.0 / jnp.sqrt(jnp.float32(input_dim))
    weight = jax.random.uniform(kw, (output_dim, input_dim), jnp.float32, -bound, bound)
    bias = jax.random.uniform(kb, (output_dim,), jnp.float32, -bound, bound)

    w_t, b_p = prepare_params(weight, bias)        # one-time prep, not per-forward
    out = jax.block_until_ready(logistic_regression_forward(x, w_t, b_p))

    # Reference: plain f32 JAX.  Tolerance covers bf16 activations/weights on the MXU
    # (f32 accumulate); the sigmoid itself is computed exactly in the kernel.
    ref = jax.nn.sigmoid(x @ weight.T + bias)
    assert out.shape == (batch, output_dim)
    assert jnp.allclose(out, ref, atol=5e-3, rtol=5e-3), float(jnp.max(jnp.abs(out - ref)))

    print("KERNEL_OK")
</pallas_src>

<mosaic_0001>
module attributes {stable_mosaic.version = 11 : i64} {
  func.func @logreg_kernel(%arg0: i32, %arg1: memref<16x32xbf16, #tpu.memory_space<vmem>>, %arg2: memref<32x8xbf16, #tpu.memory_space<vmem>>, %arg3: memref<1x8xf32, #tpu.memory_space<vmem>>, %arg4: memref<16x8xf32, #tpu.memory_space<vmem>>) attributes {dimension_semantics = [#tpu.dimension_semantics<parallel>], iteration_bounds = array<i64: 4>, scalar_prefetch = 0 : i64, scratch_operands = 0 : i64, tpu.core_type = #tpu.core_type<tc>, window_params = [{transform_indices = @transform_0, window_bounds = array<i64: 16, 32>}, {pipeline_mode = #tpu.pipeline_mode<synchronous>, transform_indices = @transform_1, window_bounds = array<i64: 32, 8>}, {pipeline_mode = #tpu.pipeline_mode<synchronous>, transform_indices = @transform_2, window_bounds = array<i64: 1, 8>}, {transform_indices = @transform_3, window_bounds = array<i64: 16, 8>}]} {
    %c0 = arith.constant 0 : index
    %c0_0 = arith.constant 0 : index
    %0 = vector.load %arg1[%c0, %c0_0] : memref<16x32xbf16, #tpu.memory_space<vmem>>, vector<16x32xbf16>
    %c0_1 = arith.constant 0 : index
    %c0_2 = arith.constant 0 : index
    %1 = vector.load %arg2[%c0_1, %c0_2] : memref<32x8xbf16, #tpu.memory_space<vmem>>, vector<32x8xbf16>
    %cst = arith.constant dense<0.000000e+00> : vector<16x8xf32>
    %2 = tpu.matmul %0, %1, %cst {dimension_numbers = #tpu.dot_dimension_numbers<[1], [0], [0], [1], [0, 0, 1, 1], [], []>} : vector<16x32xbf16>, vector<32x8xbf16>, vector<16x8xf32> -> vector<16x8xf32>
    %c0_3 = arith.constant 0 : index
    %c0_4 = arith.constant 0 : index
    %3 = vector.load %arg3[%c0_3, %c0_4] : memref<1x8xf32, #tpu.memory_space<vmem>>, vector<1x8xf32>
    %4 = vector.broadcast %3 : vector<1x8xf32> to vector<16x8xf32>
    %5 = arith.addf %2, %4 : vector<16x8xf32>
    %cst_5 = arith.constant 0.000000e+00 : f32
    %6 = vector.broadcast %cst_5 : f32 to vector<16x8xf32>
    %7 = arith.subf %6, %5 : vector<16x8xf32>
    %8 = math.exp %7 : vector<16x8xf32>
    %cst_6 = arith.constant 1.000000e+00 : f32
    %9 = vector.broadcast %cst_6 : f32 to vector<16x8xf32>
    %10 = arith.addf %9, %8 : vector<16x8xf32>
    %cst_7 = arith.constant 1.000000e+00 : f32
    %11 = vector.broadcast %cst_7 : f32 to vector<16x8xf32>
    %12 = arith.divf %11, %10 : vector<16x8xf32>
    %c0_8 = arith.constant 0 : index
    %c0_9 = arith.constant 0 : index
    %13 = vector.load %arg4[%c0_8, %c0_9] : memref<16x8xf32, #tpu.memory_space<vmem>>, vector<16x8xf32>
    tpu.vector_store %arg4[%c0_8, %c0_9], %12 {strides = array<i32>} : memref<16x8xf32, #tpu.memory_space<vmem>>, vector<16x8xf32>,
    return
  }
  func.func @transform_0(%arg0: i32) -> (i32, i32) {
    %c0_i32 = arith.constant 0 : i32
    %c0_i32_0 = arith.constant 0 : i32
    return %arg0, %c0_i32 : i32, i32
  }
  func.func @transform_1(%arg0: i32) -> (i32, i32) {
    %c0_i32 = arith.constant 0 : i32
    %c0_i32_0 = arith.constant 0 : i32
    %c0_i32_1 = arith.constant 0 : i32
    return %c0_i32, %c0_i32_0 : i32, i32
  }
  func.func @transform_2(%arg0: i32) -> (i32, i32) {
    %c0_i32 = arith.constant 0 : i32
    %c0_i32_0 = arith.constant 0 : i32
    %c0_i32_1 = arith.constant 0 : i32
    return %c0_i32, %c0_i32_0 : i32, i32
  }
  func.func @transform_3(%arg0: i32) -> (i32, i32) {
    %c0_i32 = arith.constant 0 : i32
    %c0_i32_0 = arith.constant 0 : i32
    return %arg0, %c0_i32 : i32, i32
  }
}

</mosaic_0001>

<llo_original>
// kernel: logistic_regression_forward.1
$region0: #{logistic_regression_forward.1}
  #allocation0 [shape = 'u32[]', space=smem, size = 0x4, offset = 0x4, fixed_abs, tag = 'smem constant byte address 0x4 - core index']
  #allocation1 [shape = 'u32[72,128]{1,0:T(1,128)}', space=vmem, size = 0x9000, scoped, tag = 'internal scratch']
  %s0 = inlined_call_operand.vmem [shape: bf16[64,32], index: 0, kind: input, shape index: {}]
  %s1 = inlined_call_operand.vmem [shape: bf16[32,8], index: 1, kind: input, shape index: {}]
  %s2 = inlined_call_operand.vmem [shape: f32[1,8], index: 2, kind: input, shape index: {}]
  %s3 = inlined_call_operand.vmem [shape: f32[64,8], index: 3, kind: output, shape index: {}]
  %s4 = sld [smem:[#allocation0]]
  $region45: #{logistic_regression_forward.1} parent=0
    _
  %s6 = ssub.s32 1, %s4
  %s7 = scalar_select 0, %s6, %s4
  loop: start=0, step=1, limit=6
  $region2: #{logistic_regression_forward.1} parent=0 // loop_pre_header
    _
  $region3: #{logistic_regression_forward.1} parent=0 // loop_header
    %s9 = sphi 0, %s13
    %p10 = scmp.ge.s32.totalorder %s9, 6
    %s19 = sphi 0, %s21
    %s22 = sphi 0, %s19
    %s23 = sphi 0, %s22
    %s39 = sphi 0, %s23
    %s43 = sphi 0, %s43
    %s45 = sphi 0, %s43
    %s46 = sphi 0, %s45
    %s60 = sphi 0, %s46
    %s64 = sphi 0, %s64
    %s66 = sphi 0, %s64
    %s67 = sphi 0, %s66
    %s81 = sphi 0, %s67
    %s87 = sphi 0, %s89
    %s90 = sphi 0, %s87
    %s91 = sphi 0, %s90
    %s107 = sphi 0, %s91
  $region4: #{logistic_regression_forward.1} parent=0 // loop_header_branch
    %12 = sbr.rel (%p10) target = $region8
  $region5: #{logistic_regression_forward.1} parent=0 // loop_body
    %s14 = ssub.s32 %s9, 1
    %s15 = ssub.s32 %s9, 2
    %s16 = sadd.s32 %s9, 1
    %s17 = ssub.s32 %s9, %s16
    %p18 = scmp.eq.s32.totalorder %s17, 0
    %s20 = sadd.s32 %s19, 1
    %s21 = scalar_select %p18, %s19, %s20
    %p24 = pneg %p18
    %p25 = scmp.eq.s32.totalorder %s9, 3
    %p26 = por %p24, %p25
    %p27 = scmp.ne.s32.totalorder %s19, %s22
    %p28 = scmp.eq.s32.totalorder %s9, 0
    %p29 = por %p27, %p28
    %p30 = scmp.ne.s32.totalorder %s19, %s22
    %p31 = scmp.eq.s32.totalorder %s14, 3
    %p32 = por %p30, %p31
    %p33 = scmp.ne.s32.totalorder %s22, %s23
    %p34 = scmp.eq.s32.totalorder %s14, 0
    %p35 = por %p33, %p34
    %p36 = scmp.ne.s32.totalorder %s22, %s23
    %p37 = scmp.eq.s32.totalorder %s15, 3
    %p38 = por %p36, %p37
    %p40 = scmp.ne.s32.totalorder %s23, %s39
    %p41 = scmp.eq.s32.totalorder %s15, 0
    %p42 = por %p40, %p41
    %s44 = sadd.s32 %s43, 1
    %p47 = scmp.eq.s32.totalorder %s9, 3
    %p48 = scmp.ne.s32.totalorder %s43, %s45
    %p49 = scmp.eq.s32.totalorder %s9, 0
    %p50 = por %p48, %p49
    %p51 = scmp.ne.s32.totalorder %s43, %s45
    %p52 = scmp.eq.s32.totalorder %s14, 3
    %p53 = por %p51, %p52
    %p54 = scmp.ne.s32.totalorder %s45, %s46
    %p55 = scmp.eq.s32.totalorder %s14, 0
    %p56 = por %p54, %p55
    %p57 = scmp.ne.s32.totalorder %s45, %s46
    %p58 = scmp.eq.s32.totalorder %s15, 3
    %p59 = por %p57, %p58
    %p61 = scmp.ne.s32.totalorder %s46, %s60
    %p62 = scmp.eq.s32.totalorder %s15, 0
    %p63 = por %p61, %p62
    %s65 = sadd.s32 %s64, 1
    %p68 = scmp.eq.s32.totalorder %s9, 3
    %p69 = scmp.ne.s32.totalorder %s64, %s66
    %p70 = scmp.eq.s32.totalorder %s9, 0
    %p71 = por %p69, %p70
    %p72 = scmp.ne.s32.totalorder %s64, %s66
    %p73 = scmp.eq.s32.totalorder %s14, 3
    %p74 = por %p72, %p73
    %p75 = scmp.ne.s32.totalorder %s66, %s67
    %p76 = scmp.eq.s32.totalorder %s14, 0
    %p77 = por %p75, %p76
    %p78 = scmp.ne.s32.totalorder %s66, %s67
    %p79 = scmp.eq.s32.totalorder %s15, 3
    %p80 = por %p78, %p79
    %p82 = scmp.ne.s32.totalorder %s67, %s81
    %p83 = scmp.eq.s32.totalorder %s15, 0
    %p84 = por %p82, %p83
    %s85 = ssub.s32 %s9, %s16
    %p86 = scmp.eq.s32.totalorder %s85, 0
    %s88 = sadd.s32 %s87, 1
    %s89 = scalar_select %p86, %s87, %s88
    %p92 = pneg %p86
    %p93 = scmp.eq.s32.totalorder %s9, 3
    %p94 = por %p92, %p93
    %p95 = scmp.ne.s32.totalorder %s87, %s90
    %p96 = scmp.eq.s32.totalorder %s9, 0
    %p97 = por %p95, %p96
    %p98 = scmp.ne.s32.totalorder %s87, %s90
    %p99 = scmp.eq.s32.totalorder %s14, 3
    %p100 = por %p98, %p99
    %p101 = scmp.ne.s32.totalorder %s90, %s91
    %p102 = scmp.eq.s32.totalorder %s14, 0
    %p103 = por %p101, %p102
    %p104 = scmp.ne.s32.totalorder %s90, %s91
    %p105 = scmp.eq.s32.totalorder %s15, 3
    %p106 = por %p104, %p105
    %p108 = scmp.ne.s32.totalorder %s91, %s107
    %p109 = scmp.eq.s32.totalorder %s15, 0
    %p110 = por %p108, %p109
    %p111 = scmp.le.s32.totalorder 1, %s9
    %p112 = scmp.lt.s32.totalorder %s9, 5
    %p113 = pnand %p111, %p112
    %p114 = pneg %p113
    // Predicated region
    $region9: #{logistic_regression_forward.1} parent=5 // pred_check
      _
    $region10: #{logistic_regression_forward.1} parent=5 // pred_check_branch
      %116 = sbr.rel (%p113) target = $region12
    $region11: #{logistic_regression_forward.1} parent=5 // pred_region
      %s117 = ssub.s32 %s9, 1
      // Predicated region
      $region13: #{logistic_regression_forward.1} parent=11 // pred_check
        %p118 = pneg %p56
      $region14: #{logistic_regression_forward.1} parent=11 // pred_check_branch
        %120 = sbr.rel (%p118) target = $region16
      $region15: #{logistic_regression_forward.1} parent=11 // pred_region
        _
      $region16: #{logistic_regression_forward.1} parent=11 // pred_fallthru
        _
      // Predicated region
      $region17: #{logistic_regression_forward.1} parent=11 // pred_check
        %p121 = pneg %p77
      $region18: #{logistic_regression_forward.1} parent=11 // pred_check_branch
        %123 = sbr.rel (%p121) target = $region20
      $region19: #{logistic_regression_forward.1} parent=11 // pred_region
        _
      $region20: #{logistic_regression_forward.1} parent=11 // pred_fallthru
        _
    $region12: #{logistic_regression_forward.1} parent=5 // pred_fallthru
      _
    %p124 = scmp.lt.s32.totalorder %s9, 4
    // Predicated region
    $region21: #{logistic_regression_forward.1} parent=5 // pred_check
      %p125 = pneg %p124
    $region22: #{logistic_regression_forward.1} parent=5 // pred_check_branch
      %127 = sbr.rel (%p125) target = $region24
    $region23: #{logistic_regression_forward.1} parent=5 // pred_region
      // Predicated region
      $region25: #{logistic_regression_forward.1} parent=23 // pred_check
        %p128 = pneg %p29
      $region26: #{logistic_regression_forward.1} parent=23 // pred_check_branch
        %130 = sbr.rel (%p128) target = $region28
      $region27: #{logistic_regression_forward.1} parent=23 // pred_region
        %s131 = smul.u32 2, %s9
        %p132 = scmp.lt.s32.totalorder %s131, 7
        %s133 = scalar_select %p132, %s131, 7
        %s134 = smul.addr %s133, 4
        %s135 = scalar_lea.vmem %s0, %s134
        %s136 = smul.u32 2, %s9
      $region28: #{logistic_regression_forward.1} parent=23 // pred_fallthru
        _
    $region24: #{logistic_regression_forward.1} parent=5 // pred_fallthru
      _
    %p137 = scmp.le.s32.totalorder 1, %s9
    %p138 = scmp.lt.s32.totalorder %s9, 5
    %p139 = pnand %p137, %p138
    %p140 = pneg %p139
    // Predicated region
    $region29: #{logistic_regression_forward.1} parent=5 // pred_check
      _
    $region30: #{logistic_regression_forward.1} parent=5 // pred_check_branch
      %142 = sbr.rel (%p139) target = $region32
    $region31: #{logistic_regression_forward.1} parent=5 // pred_region
      %s143 = ssub.s32 %s9, 1
      %s144 = smul.u32 2, %s14
      %p145 = scmp.lt.s32.totalorder %s144, 7
      %s146 = scalar_select %p145, %s144, 7
      %s147 = smul.addr %s146, 4
      %s148 = scalar_lea.vmem %s0, %s147
      %p149 = pneg %p35
      %p150 = pneg %p32
      %p151 = pneg %p56
      %p152 = pneg %p53
      %p153 = pneg %p77
      %p154 = pneg %p74
      %p155 = pneg %p103
      %p156 = pneg %p100
      %s157 = smul.u32 2, %s14
      %p158 = scmp.lt.s32.totalorder %s157, 7
      %s159 = scalar_select %p158, %s157, 7
      %s160 = smul.addr %s159, 8
      %s161 = scalar_lea.vmem %s3, %s160
      %s162 = smul.u32 2, %s14
      %p163 = scmp.lt.s32.totalorder %s162, 7
      %s164 = scalar_select %p163, %s162, 7
      %s165 = smul.addr %s164, 4
      %s166 = scalar_lea.vmem %s0, %s165
      %s167 = smul.u32 2, %s14
      %s168 = smul.u32 2, %s14
      %p169 = scmp.lt.s32.totalorder %s168, 7
      %s170 = scalar_select %p169, %s168, 7
      %s171 = smul.addr %s170, 8
      %s172 = scalar_lea.vmem %s3, %s171
      %s173 = smul.u32 2, %s14
      %v175 = vld [vmem:[%s166] sm:$0xf]
      %v176 = vld [vmem:[%s166 + $0x4] sm:$0xf]
      %v177 = vld [vmem:[%s1] sm:$0xf]
      %v178 = vld [vmem:[%s1 + $0x4] sm:$0xf]
      %v179 = vld [vmem:[%s1 + $0x8] sm:$0xf]
      %v180 = vld [vmem:[%s1 + $0xc] sm:$0xf]
      %v181 = vld [vmem:[%s2] sm:$0x1]
      %v183 = vperm.slane %v181, 0
      %v187 = vunpack.c.l.b16 %v175
      %v188 = vunpack.c.l.b16 %v176
      %v189 = vpack.c.b16 %v188, %v187
      %v194 = vunpack.c.l.b16 %v177
      %v195 = vunpack.c.l.b16 %v178
      %v196 = vunpack.c.l.b16 %v179
      %v197 = vunpack.c.l.b16 %v180
      %v198 = vpack.c.b16 %v195, %v194
      %v199 = vpack.c.b16 %v197, %v196
      %vm202 = vcmask 261120
      %v204 = vsel %vm202, %v189, 0
      %206 = vmatpush.bf16.msra.mxu0 0
      %207 = vmatpush.bf16.msra.mxu0 0
      %208 = vmatpush.bf16.msra.mxu0 0
      %209 = vmatpush.bf16.msra.mxu0 0
      %210 = vmatpush.bf16.msra.mxu0 0
      %211 = vmatpush.bf16.msra.mxu0 0
      %212 = vmatpush.bf16.msra.mxu0 %v199
      %213 = vmatpush.bf16.msra.mxu0 %v198
      %214 = vmatmul.bf16.gmra.mxu0 %v204
      %v215 = vpop.f32.mrf.mxu0
      %v216 = vadd.f32 %v183, %v215
      %v217 = vpop.f32.mrf.mxu0
      %v218 = vadd.f32 %v183, %v217
      %219 = vdwg.mxu0
      %v220 = vsub.f32 0.0, %v216
      %v221 = vsub.f32 0.0, %v218
      %v222 = vmul.f32 %v220, 1.442695
      %v223 = vpow.pop %v222
      %v224 = vmul.f32 %v221, 1.442695
      %v225 = vpow.pop %v224
      %v226 = vadd.f32 %v223, 1.0
      %v227 = vadd.f32 %v225, 1.0
      %v228 = vrcp.pop %v226
      %v229 = vmul.f32 %v226, %v228
      %v230 = vsub.f32 1.0, %v229
      %v231 = vmul.f32 %v228, %v230
      %v232 = vadd.f32 %v228, %v231
      %vm233 = vweird.f32 %v226
      %vm234 = vweird.f32 %v228
      %vm235 = vmor %vm233, %vm234
      %v236 = vsel %vm235, %v228, %v232
      %v237 = vand.u32 2147483647, %v226
      %vm238 = vcmp.eq.f32.partialorder %v237, 8.507059e+37
      %v239 = vand.u32 %v226, 2147483648
      %v240 = vor.u32 1.1754944e-38, %v239
      %v241 = vsel %vm238, %v240, %v236
      %v242 = vmul.f32 1.0, %v241
      %v243 = vrcp.pop %v227
      %v244 = vmul.f32 %v227, %v243
      %v245 = vsub.f32 1.0, %v244
      %v246 = vmul.f32 %v243, %v245
      %v247 = vadd.f32 %v243, %v246
      %vm248 = vweird.f32 %v227
      %vm249 = vweird.f32 %v243
      %vm250 = vmor %vm248, %vm249
      %v251 = vsel %vm250, %v243, %v247
      %v252 = vand.u32 2147483647, %v227
      %vm253 = vcmp.eq.f32.partialorder %v252, 8.507059e+37
      %v254 = vand.u32 %v227, 2147483648
      %v255 = vor.u32 1.1754944e-38, %v254
      %v256 = vsel %vm253, %v255, %v251
      %v257 = vmul.f32 1.0, %v256
      %vm258 = vcmask 64512
      %259 = vst.msk [vmem:[%s172] sm:$0xff] %vm258, %v242
      %260 = vst.msk [vmem:[%s172 + $0x8] sm:$0xff] %vm258, %v257
      %s261 = smul.u32 2, %s14
      %p262 = scmp.lt.s32.totalorder %s261, 7
      %s263 = scalar_select %p262, %s261, 7
      %s264 = smul.addr %s263, 8
      %s265 = scalar_lea.vmem %s3, %s264
      // Predicated region
      $region33: #{logistic_regression_forward.1} parent=31 // pred_check
        %p266 = pneg %p100
      $region34: #{logistic_regression_forward.1} parent=31 // pred_check_branch
        %268 = sbr.rel (%p266) target = $region36
      $region35: #{logistic_regression_forward.1} parent=31 // pred_region
        %s269 = smul.u32 2, %s14
      $region36: #{logistic_regression_forward.1} parent=31 // pred_fallthru
        _
    $region32: #{logistic_regression_forward.1} parent=5 // pred_fallthru
      _
    %p270 = scmp.le.s32.totalorder 2, %s9
    // Predicated region
    $region37: #{logistic_regression_forward.1} parent=5 // pred_check
      %p271 = pneg %p270
    $region38: #{logistic_regression_forward.1} parent=5 // pred_check_branch
      %273 = sbr.rel (%p271) target = $region40
    $region39: #{logistic_regression_forward.1} parent=5 // pred_region
      %s274 = ssub.s32 %s9, 2
      // Predicated region
      $region41: #{logistic_regression_forward.1} parent=39 // pred_check
        %p275 = pneg %p106
      $region42: #{logistic_regression_forward.1} parent=39 // pred_check_branch
        %277 = sbr.rel (%p275) target = $region44
      $region43: #{logistic_regression_forward.1} parent=39 // pred_region
        %s278 = smul.u32 2, %s15
        %p279 = scmp.lt.s32.totalorder %s278, 7
        %s280 = scalar_select %p279, %s278, 7
        %s281 = smul.addr %s280, 8
        %s282 = scalar_lea.vmem %s3, %s281
      $region44: #{logistic_regression_forward.1} parent=39 // pred_fallthru
        _
    $region40: #{logistic_regression_forward.1} parent=5 // pred_fallthru
      _
  $region6: #{logistic_regression_forward.1} parent=0 // loop_footer
    %s13 = sadd.s32 1, %s9
  $region7: #{logistic_regression_forward.1} parent=0 // loop_footer_branch
    %8 = sbr.rel target = $region3
  $region8: #{logistic_regression_forward.1} parent=0 // loop_exit
    _

</llo_original>
